<compile_context>
chip_gen: v7x
topology: tpu7x:2x2x1
jax: 0.10.0
libtpu: 0.0.40
codegen_flags: <defaults>
</compile_context>

<pallas_src>
from functools import partial
from itertools import product

import jax
import jax.numpy as jnp
from jax import lax
from jax.experimental import pallas as pl
from jax.experimental.pallas import tpu as pltpu

MIB = 1024 * 1024
_TILE_M_CAP = 32768  # fallback path: columns per M tile (budget-bounded below)
_MODE_CACHE = {}     # (shape signature) -> "fused" | "matmul"


# --------------------------------------------------------------------------------------
# hardware queries (wrapped: never allowed to break the kernel)
# --------------------------------------------------------------------------------------
def _vmem_capacity_bytes():
    try:
        return int(pltpu.get_tpu_info().vmem_capacity_bytes)
    except Exception:
        return 64 * MIB  # conservative default (v7x per-TensorCore VMEM)


def _vmem_limit_bytes():
    # leave >=16 MiB headroom for compiler-internal scratch; cap well under physical VMEM
    # (=> ~48 MiB on v7x, ~112 MiB on v5e / v6e).
    return int(max(32 * MIB, min(_vmem_capacity_bytes() - 16 * MIB, 112 * MIB)))


def _probably_multi_tensorcore():
    # Only v5e / v6e are single-TensorCore parts; splitting one full-extent tile into two
    # grid steps buys nothing there (feedback), so gate the megacore split on device kind.
    try:
        kind = jax.devices()[0].device_kind.lower()
        return not any(s in kind for s in ("v5e", "v5 lite", "v5lite", "v6e", "v6 lite", "v6lite"))
    except Exception:
        return True


def _round_up(x, m):
    return ((x + m - 1) // m) * m


# --------------------------------------------------------------------------------------
# PRIMARY fused kernel: matmul + in-kernel tap interleave, output stored in final layout
# --------------------------------------------------------------------------------------
def _fused_deconv_kernel(c_out, h, w, w_ref, b_ref, x_ref, o_ref):
    """One (batch, depth-slice) grid step.

    w_ref : (8*c_out, c_in)  rows ordered (kd, kh, kw, co)  -- resident in VMEM
    b_ref : (8*c_out, 1)     bias[co] replicated per tap    -- resident in VMEM
    x_ref : (c_in, h*w)      one input depth slice, columns = flat (h, w)
    o_ref : (c_out, 2, h, 2, 2*w) == out[n, :, d, kd, :, kh, 2w+kw]
    """
    acc = jnp.dot(w_ref[...], x_ref[...], preferred_element_type=jnp.float32)
    acc = acc + b_ref[...]  # (8*c_out, h*w)

    # Constant 0/1 spreading matrices: right-multiplying by s_even / s_odd places a
    # length-w row into the even / odd lanes of a length-2w row.  The (w, kw) lane
    # interleave therefore runs on the MXU (exact in f32) instead of a cross-lane shuffle,
    # and the kd / kh taps below are plain static indices into the output block.
    row = lax.broadcasted_iota(jnp.int32, (w, 2 * w), 0)
    col = lax.broadcasted_iota(jnp.int32, (w, 2 * w), 1)
    s_even = (col == 2 * row).astype(jnp.float32)
    s_odd = (col == 2 * row + 1).astype(jnp.float32)

    for kd in range(2):
        for kh in range(2):
            t0 = ((kd * 2 + kh) * 2 + 0) * c_out
            t1 = ((kd * 2 + kh) * 2 + 1) * c_out
            # (c_out, h*w) -> (c_out*h, w): bring w onto the lane axis (in-VMEM relayout,
            # cheap relative to the HBM DMA bound at these sizes).
            p_even = acc[t0:t0 + c_out, :].reshape(c_out * h, w)
            p_odd = acc[t1:t1 + c_out, :].reshape(c_out * h, w)
            slab = jnp.dot(p_even, s_even, preferred_element_type=jnp.float32)
            slab = slab + jnp.dot(p_odd, s_odd, preferred_element_type=jnp.float32)
            o_ref[:, kd, :, kh, :] = slab.reshape(c_out, h, 2 * w).astype(o_ref.dtype)


def _fused_fits_vmem(x_shape, w_shape):
    """Conservative (layout-padded) VMEM estimate for one fused grid step."""
    n, c_in, d, h, w = x_shape
    c_out = w_shape[1]
    hw = h * w
    lane = lambda v: _round_up(v, 128)
    sub = lambda v: _round_up(v, 8)
    f32 = 4
    x_blk = sub(c_in) * lane(hw) * f32
    out_blk = c_out * 2 * h * 8 * lane(2 * w) * f32          # last two dims (2, 2W) pad to (8, 128k)
    w_blk = sub(8 * c_out) * lane(c_in) * f32
    b_blk = sub(8 * c_out) * lane(1) * f32
    acc = sub(8 * c_out) * lane(hw) * f32
    interm = 2 * (c_out * h) * lane(w) * f32 + 2 * (c_out * h) * lane(2 * w) * f32
    need = 2 * (x_blk + out_blk + w_blk + b_blk) + acc + interm
    return need <= int(0.6 * _vmem_limit_bytes())


def _deconv3d_fused_impl(x_ncdhw, weight, bias):
    n, c_in, d, h, w = x_ncdhw.shape
    c_out = weight.shape[1]
    co8 = 8 * c_out
    hw = h * w

    x4 = x_ncdhw.reshape(n, c_in, d, hw)                                # free (merge trailing dims)
    w_t = jnp.transpose(weight, (2, 3, 4, 1, 0)).reshape(co8, c_in)     # rows (kd, kh, kw, co)
    b_col = jnp.tile(bias, 8).reshape(co8, 1)                           # bias[row % c_out] = bias[co]

    kernel = partial(_fused_deconv_kernel, c_out, h, w)
    out7 = pl.pallas_call(
        kernel,
        # output already in (n, co, d, kd, h, kh, 2w+kw) layout -> final reshape is free
        out_shape=jax.ShapeDtypeStruct((n, c_out, d, 2, h, 2, 2 * w), x_ncdhw.dtype),
        grid_spec=pltpu.PrefetchScalarGridSpec(
            num_scalar_prefetch=0,
            grid=(n, d),
            in_specs=[
                # constant index maps -> fetched once, kept resident in VMEM
                pl.BlockSpec((co8, c_in), lambda i, j: (0, 0)),
                pl.BlockSpec((co8, 1), lambda i, j: (0, 0)),
                # one depth slice per step, flat (h, w) lane-dense columns
                pl.BlockSpec((None, c_in, None, hw), lambda i, j: (i, 0, j, 0)),
            ],
            out_specs=pl.BlockSpec((None, c_out, None, 2, h, 2, 2 * w),
                                   lambda i, j: (i, 0, j, 0, 0, 0, 0)),
        ),
        compiler_params=pltpu.CompilerParams(
            dimension_semantics=("parallel", "parallel"),
            vmem_limit_bytes=_vmem_limit_bytes(),
        ),
    )(w_t, b_col, x4)

    # free reshape: merges (d, kd) -> 2D and (h, kh) -> 2H; (w, kw) already merged in-kernel
    return out7.reshape(n, c_out, 2 * d, 2 * h, 2 * w)


# --------------------------------------------------------------------------------------
# FALLBACK kernel: lane-dense matmul + one fused XLA transpose (previously validated)
# --------------------------------------------------------------------------------------
def _deconv_matmul_kernel(w_ref, b_ref, x_ref, o_ref):
    # w_ref: (8*C_out, C_in), b_ref: (8*C_out, 1), x_ref: (C_in, TM), o_ref: (8*C_out, TM)
    acc = jnp.dot(w_ref[...], x_ref[...], preferred_element_type=jnp.float32)
    o_ref[...] = (acc + b_ref[...]).astype(o_ref.dtype)


def _choose_tile_m(m_s, row_bytes, cap, budget):
    """Largest 128-aligned divisor of m_s (or m_s itself) that fits the VMEM budget & cap."""
    cands = [t for t in range(128, m_s + 1, 128) if m_s % t == 0]
    cands.append(m_s)  # full extent is always a legal block dim
    cands = sorted({t for t in cands if t * row_bytes <= budget})
    if not cands:
        return None
    under = [t for t in cands if t <= cap]
    return under[-1] if under else cands[0]


def _deconv3d_matmul_impl(x_ncdhw, weight, bias):
    n, c_in, d, h, w = x_ncdhw.shape
    c_out = weight.shape[1]
    co8 = 8 * c_out
    m_s = d * h * w

    x3 = x_ncdhw.reshape(n, c_in, m_s)                                  # free reshape
    w_t = jnp.transpose(weight, (1, 2, 3, 4, 0)).reshape(co8, c_in)     # rows (co, kd, kh, kw)
    b_col = jnp.repeat(bias, 8).reshape(co8, 1)                         # bias[row // 8] = bias[co]

    # generation-aware VMEM numbers (feedback): big tiles on 128 MiB parts, <=48 MiB on v7x
    vmem_limit = _vmem_limit_bytes()
    row_bytes = 2 * 4 * (_round_up(c_in, 8) + co8)  # double-buffered x + out, per M column
    resident = 2 * co8 * 4 * (_round_up(c_in, 128) + 128)
    budget = max(int(0.7 * vmem_limit) - resident, 128 * row_bytes)
    tm = _choose_tile_m(m_s, row_bytes, cap=_TILE_M_CAP, budget=budget)
    pad = 0
    if tm is None:  # rare: no 128-aligned divisor under budget -> pad M (slice fused under jit)
        pad = (-m_s) % 128
        x3 = jnp.pad(x3, ((0, 0), (0, 0), (0, pad)))
        tm = _choose_tile_m(m_s + pad, row_bytes, cap=_TILE_M_CAP, budget=budget)
        assert tm is not None, "no feasible M tile under the VMEM budget"
    m_eff = m_s + pad

    # megacore split only on multi-TensorCore parts; keep split tiles >= 512 columns
    if _probably_multi_tensorcore() and n * (m_eff // tm) < 2:
        smaller = [t for t in range(512, tm // 2 + 1, 128) if m_eff % t == 0]
        if smaller:
            tm = smaller[-1]

    grid = (n, m_eff // tm)

    out_t = pl.pallas_call(
        _deconv_matmul_kernel,
        out_shape=jax.ShapeDtypeStruct((n, co8, m_eff), x_ncdhw.dtype),
        grid_spec=pltpu.PrefetchScalarGridSpec(
            num_scalar_prefetch=0,
            grid=grid,
            in_specs=[
                pl.BlockSpec((co8, c_in), lambda i, j: (0, 0)),
                pl.BlockSpec((co8, 1), lambda i, j: (0, 0)),
                pl.BlockSpec((None, c_in, tm), lambda i, j: (i, 0, j)),
            ],
            out_specs=pl.BlockSpec((None, co8, tm), lambda i, j: (i, 0, j)),
        ),
        compiler_params=pltpu.CompilerParams(
            dimension_semantics=("parallel", "parallel"),
            vmem_limit_bytes=vmem_limit,
        ),
    )(w_t, b_col, x3)

    if pad:
        out_t = out_t[:, :, :m_s]

    # single fused layout pass: rows (co,kd,kh,kw) x cols (d,h,w) -> NCDHW
    out = out_t.reshape(n, c_out, 2, 2, 2, d, h, w)
    out = jnp.transpose(out, (0, 1, 5, 2, 6, 3, 7, 4))
    return out.reshape(n, c_out, 2 * d, 2 * h, 2 * w)


_deconv3d_fused_path = jax.jit(_deconv3d_fused_impl)
_deconv3d_matmul_path = jax.jit(_deconv3d_matmul_impl)


# --------------------------------------------------------------------------------------
# public entry point: probe the fused path once per shape, verified fallback otherwise
# --------------------------------------------------------------------------------------
def deconv3d_pallas(x_ncdhw, weight, bias):
    """ConvTranspose3d with kernel_size=2, stride=2, padding=0 (matches PyTorch Deconv3d).

    x_ncdhw: (N, C_in, D, H, W) float32
    weight : (C_in, C_out, 2, 2, 2) float32   (PyTorch ConvTranspose3d layout)
    bias   : (C_out,) float32
    returns: (N, C_out, 2D, 2H, 2W) float32
    """
    key = (tuple(x_ncdhw.shape), tuple(weight.shape), str(x_ncdhw.dtype))
    mode = _MODE_CACHE.get(key)
    if mode == "fused":
        return _deconv3d_fused_path(x_ncdhw, weight, bias)
    if mode == "matmul":
        return _deconv3d_matmul_path(x_ncdhw, weight, bias)

    # First call for this shape: run the known-good fallback once and use it to validate
    # the fused path (compile + numerics) before committing to it.  One-time probe cost;
    # steady-state calls take the cached single-pass fused path.
    ref = jax.block_until_ready(_deconv3d_matmul_path(x_ncdhw, weight, bias))
    if _fused_fits_vmem(x_ncdhw.shape, weight.shape):
        try:
            out = jax.block_until_ready(_deconv3d_fused_path(x_ncdhw, weight, bias))
            if bool(jnp.allclose(out, ref, atol=1e-4, rtol=1e-4)):
                _MODE_CACHE[key] = "fused"
                return out
        except Exception:
            pass
    _MODE_CACHE[key] = "matmul"
    return ref


# --------------------------------------------------------------------------------------
# pure-JAX reference + self-test
# --------------------------------------------------------------------------------------
def _reference_deconv3d(x_ncdhw, weight, bias):
    """Direct scatter form of the stride-2, k=2 transposed conv."""
    n, c_in, d, h, w = x_ncdhw.shape
    c_out = weight.shape[1]
    ref = jnp.zeros((n, c_out, 2 * d, 2 * h, 2 * w), dtype=jnp.float32)
    for kd, kh, kw in product(range(2), repeat=3):
        contrib = jnp.einsum("ncdhw,cm->nmdhw", x_ncdhw, weight[:, :, kd, kh, kw])
        contrib = contrib + bias[None, :, None, None, None]
        ref = ref.at[:, :, kd::2, kh::2, kw::2].set(contrib)
    return ref


if __name__ == "__main__":
    key = jax.random.PRNGKey(0)
    k_x, k_w, k_b = jax.random.split(key, 3)

    # small shapes consistent with Deconv3d's forward: NCDHW input
    N, C_IN, C_OUT = 2, 4, 8
    D = H = W = 8

    x = jax.random.normal(k_x, (N, C_IN, D, H, W), dtype=jnp.float32)

    # deterministic xavier-uniform-style init for ConvTranspose3d weight (C_in, C_out, 2, 2, 2)
    fan_in = C_OUT * 2 * 2 * 2
    fan_out = C_IN * 2 * 2 * 2
    limit = (6.0 / (fan_in + fan_out)) ** 0.5
    weight = jax.random.uniform(
        k_w, (C_IN, C_OUT, 2, 2, 2), dtype=jnp.float32, minval=-limit, maxval=limit
    )
    b_limit = 1.0 / (C_IN * 2 * 2 * 2) ** 0.5
    bias = jax.random.uniform(
        k_b, (C_OUT,), dtype=jnp.float32, minval=-b_limit, maxval=b_limit
    )

    out = deconv3d_pallas(x, weight, bias)
    out = jax.block_until_ready(out)

    ref = _reference_deconv3d(x, weight, bias)
    assert out.shape == (N, C_OUT, 2 * D, 2 * H, 2 * W), out.shape
    assert jnp.allclose(out, ref, atol=1e-5, rtol=1e-5), float(jnp.abs(out - ref).max())

    print("KERNEL_OK")
</pallas_src>

<mosaic_0001>
module attributes {stable_mosaic.version = 11 : i64} {
  func.func @_deconv_matmul_kernel(%arg0: i32, %arg1: i32, %arg2: memref<64x4xf32, #tpu.memory_space<vmem>>, %arg3: memref<64x1xf32, #tpu.memory_space<vmem>>, %arg4: memref<1x4x512xf32, #tpu.memory_space<vmem>>, %arg5: memref<1x64x512xf32, #tpu.memory_space<vmem>>) attributes {dimension_semantics = [#tpu.dimension_semantics<parallel>, #tpu.dimension_semantics<parallel>], iteration_bounds = array<i64: 2, 1>, scalar_prefetch = 0 : i64, scratch_operands = 0 : i64, tpu.core_type = #tpu.core_type<tc>, window_params = [{pipeline_mode = #tpu.pipeline_mode<synchronous>, transform_indices = @transform_0, window_bounds = array<i64: 64, 4>}, {pipeline_mode = #tpu.pipeline_mode<synchronous>, transform_indices = @transform_1, window_bounds = array<i64: 64, 1>}, {transform_indices = @transform_2, window_bounds = array<i64: 1, 4, 512>}, {transform_indices = @transform_3, window_bounds = array<i64: 1, 64, 512>}]} {
    %c0 = arith.constant 0 : index
    %c0_0 = arith.constant 0 : index
    %0 = vector.load %arg2[%c0, %c0_0] : memref<64x4xf32, #tpu.memory_space<vmem>>, vector<64x4xf32>
    %c0_1 = arith.constant 0 : index
    %c0_2 = arith.constant 0 : index
    %c0_3 = arith.constant 0 : index
    %1 = vector.load %arg4[%c0_1, %c0_2, %c0_3] : memref<1x4x512xf32, #tpu.memory_space<vmem>>, vector<1x4x512xf32>
    %2 = vector.shape_cast %1 : vector<1x4x512xf32> to vector<4x512xf32>
    %cst = arith.constant dense<0.000000e+00> : vector<64x512xf32>
    %3 = tpu.matmul %0, %2, %cst {dimension_numbers = #tpu.dot_dimension_numbers<[1], [0], [0], [1], [0, 0, 1, 1], [], []>} : vector<64x4xf32>, vector<4x512xf32>, vector<64x512xf32> -> vector<64x512xf32>
    %c0_4 = arith.constant 0 : index
    %c0_5 = arith.constant 0 : index
    %4 = vector.load %arg3[%c0_4, %c0_5] : memref<64x1xf32, #tpu.memory_space<vmem>>, vector<64x1xf32>
    %5 = vector.broadcast %4 : vector<64x1xf32> to vector<64x512xf32>
    %6 = arith.addf %3, %5 : vector<64x512xf32>
    %c0_6 = arith.constant 0 : index
    %c0_7 = arith.constant 0 : index
    %c0_8 = arith.constant 0 : index
    %7 = vector.load %arg5[%c0_6, %c0_7, %c0_8] : memref<1x64x512xf32, #tpu.memory_space<vmem>>, vector<1x64x512xf32>
    %8 = vector.shape_cast %7 : vector<1x64x512xf32> to vector<64x512xf32>
    %9 = vector.shape_cast %6 : vector<64x512xf32> to vector<1x64x512xf32>
    tpu.vector_store %arg5[%c0_6, %c0_7, %c0_8], %9 {strides = array<i32>} : memref<1x64x512xf32, #tpu.memory_space<vmem>>, vector<1x64x512xf32>,
    return
  }
  func.func @transform_0(%arg0: i32, %arg1: i32) -> (i32, i32) {
    %c0_i32 = arith.constant 0 : i32
    %c0_i32_0 = arith.constant 0 : i32
    %c0_i32_1 = arith.constant 0 : i32
    return %c0_i32, %c0_i32_0 : i32, i32
  }
  func.func @transform_1(%arg0: i32, %arg1: i32) -> (i32, i32) {
    %c0_i32 = arith.constant 0 : i32
    %c0_i32_0 = arith.constant 0 : i32
    %c0_i32_1 = arith.constant 0 : i32
    return %c0_i32, %c0_i32_0 : i32, i32
  }
  func.func @transform_2(%arg0: i32, %arg1: i32) -> (i32, i32, i32) {
    %c0_i32 = arith.constant 0 : i32
    %c0_i32_0 = arith.constant 0 : i32
    return %arg0, %c0_i32, %arg1 : i32, i32, i32
  }
  func.func @transform_3(%arg0: i32, %arg1: i32) -> (i32, i32, i32) {
    %c0_i32 = arith.constant 0 : i32
    %c0_i32_0 = arith.constant 0 : i32
    return %arg0, %c0_i32, %arg1 : i32, i32, i32
  }
}

</mosaic_0001>

<llo_original>
// kernel: _deconv3d_matmul_impl.1
$region0: #{_deconv3d_matmul_impl.1}
  #allocation0 [shape = 'u32[]', space=smem, size = 0x4, offset = 0x4, fixed_abs, tag = 'smem constant byte address 0x4 - core index']
  #allocation1 [shape = 'u32[144,128]{1,0:T(1,128)}', space=vmem, size = 0x12000, scoped, tag = 'internal scratch']
  %s0 = inlined_call_operand.vmem [shape: f32[64,4], index: 0, kind: input, shape index: {}]
  %s1 = inlined_call_operand.vmem [shape: f32[64,1], index: 1, kind: input, shape index: {}]
  %s2 = inlined_call_operand.vmem [shape: f32[2,4,512], index: 2, kind: input, shape index: {}]
  %s3 = inlined_call_operand.vmem [shape: f32[2,64,512], index: 3, kind: output, shape index: {}]
  %s4 = sld [smem:[#allocation0]]
  $region45: #{_deconv3d_matmul_impl.1} parent=0
    _
  %s6 = ssub.s32 1, %s4
  %s7 = scalar_select 0, %s6, %s4
  loop: start=0, step=1, limit=4
  $region2: #{_deconv3d_matmul_impl.1} parent=0 // loop_pre_header
    _
  $region3: #{_deconv3d_matmul_impl.1} parent=0 // loop_header
    %s9 = sphi 0, %s13
    %p10 = scmp.ge.s32.totalorder %s9, 4
    %s16 = sphi 0, %s28
    %s17 = sphi 0, %s24
    %s18 = sphi 0, %s16
    %s19 = sphi 0, %s17
    %s20 = sphi 0, %s18
    %s21 = sphi 0, %s19
    %s29 = sphi 0, %s29
    %s31 = sphi 0, %s29
    %s32 = sphi 0, %s31
    %s46 = sphi 0, %s32
    %s50 = sphi 0, %s50
    %s52 = sphi 0, %s50
    %s53 = sphi 0, %s52
    %s67 = sphi 0, %s53
    %s75 = sphi 0, %s77
    %s78 = sphi 0, %s75
    %s79 = sphi 0, %s78
    %s95 = sphi 0, %s79
    %s103 = sphi 0, %s105
    %s106 = sphi 0, %s103
    %s107 = sphi 0, %s106
    %s123 = sphi 0, %s107
  $region4: #{_deconv3d_matmul_impl.1} parent=0 // loop_header_branch
    %12 = sbr.rel (%p10) target = $region8
  $region5: #{_deconv3d_matmul_impl.1} parent=0 // loop_body
    %s14 = ssub.s32 %s9, 1
    %s15 = ssub.s32 %s9, 2
    %s22 = sadd.s32 1, %s17
    %p23 = scmp.ge.s32.totalorder %s22, 1
    %s24 = scalar_select %p23, 0, %s22
    %s25 = sadd.s32 1, %s16
    %s26 = scalar_select %p23, %s25, %s16
    %p27 = scmp.ge.s32.totalorder %s26, 2
    %s28 = scalar_select %p27, 0, %s26
    %s30 = sadd.s32 %s29, 1
    %p33 = scmp.eq.s32.totalorder %s9, 1
    %p34 = scmp.ne.s32.totalorder %s29, %s31
    %p35 = scmp.eq.s32.totalorder %s9, 0
    %p36 = por %p34, %p35
    %p37 = scmp.ne.s32.totalorder %s29, %s31
    %p38 = scmp.eq.s32.totalorder %s14, 1
    %p39 = por %p37, %p38
    %p40 = scmp.ne.s32.totalorder %s31, %s32
    %p41 = scmp.eq.s32.totalorder %s14, 0
    %p42 = por %p40, %p41
    %p43 = scmp.ne.s32.totalorder %s31, %s32
    %p44 = scmp.eq.s32.totalorder %s15, 1
    %p45 = por %p43, %p44
    %p47 = scmp.ne.s32.totalorder %s32, %s46
    %p48 = scmp.eq.s32.totalorder %s15, 0
    %p49 = por %p47, %p48
    %s51 = sadd.s32 %s50, 1
    %p54 = scmp.eq.s32.totalorder %s9, 1
    %p55 = scmp.ne.s32.totalorder %s50, %s52
    %p56 = scmp.eq.s32.totalorder %s9, 0
    %p57 = por %p55, %p56
    %p58 = scmp.ne.s32.totalorder %s50, %s52
    %p59 = scmp.eq.s32.totalorder %s14, 1
    %p60 = por %p58, %p59
    %p61 = scmp.ne.s32.totalorder %s52, %s53
    %p62 = scmp.eq.s32.totalorder %s14, 0
    %p63 = por %p61, %p62
    %p64 = scmp.ne.s32.totalorder %s52, %s53
    %p65 = scmp.eq.s32.totalorder %s15, 1
    %p66 = por %p64, %p65
    %p68 = scmp.ne.s32.totalorder %s53, %s67
    %p69 = scmp.eq.s32.totalorder %s15, 0
    %p70 = por %p68, %p69
    %s71 = ssub.s32 %s16, %s28
    %s72 = ssub.s32 %s17, %s24
    %s73 = sor.u32 %s71, %s72
    %p74 = scmp.eq.s32.totalorder %s73, 0
    %s76 = sadd.s32 %s75, 1
    %s77 = scalar_select %p74, %s75, %s76
    %p80 = pneg %p74
    %p81 = scmp.eq.s32.totalorder %s9, 1
    %p82 = por %p80, %p81
    %p83 = scmp.ne.s32.totalorder %s75, %s78
    %p84 = scmp.eq.s32.totalorder %s9, 0
    %p85 = por %p83, %p84
    %p86 = scmp.ne.s32.totalorder %s75, %s78
    %p87 = scmp.eq.s32.totalorder %s14, 1
    %p88 = por %p86, %p87
    %p89 = scmp.ne.s32.totalorder %s78, %s79
    %p90 = scmp.eq.s32.totalorder %s14, 0
    %p91 = por %p89, %p90
    %p92 = scmp.ne.s32.totalorder %s78, %s79
    %p93 = scmp.eq.s32.totalorder %s15, 1
    %p94 = por %p92, %p93
    %p96 = scmp.ne.s32.totalorder %s79, %s95
    %p97 = scmp.eq.s32.totalorder %s15, 0
    %p98 = por %p96, %p97
    %s99 = ssub.s32 %s16, %s28
    %s100 = ssub.s32 %s17, %s24
    %s101 = sor.u32 %s99, %s100
    %p102 = scmp.eq.s32.totalorder %s101, 0
    %s104 = sadd.s32 %s103, 1
    %s105 = scalar_select %p102, %s103, %s104
    %p108 = pneg %p102
    %p109 = scmp.eq.s32.totalorder %s9, 1
    %p110 = por %p108, %p109
    %p111 = scmp.ne.s32.totalorder %s103, %s106
    %p112 = scmp.eq.s32.totalorder %s9, 0
    %p113 = por %p111, %p112
    %p114 = scmp.ne.s32.totalorder %s103, %s106
    %p115 = scmp.eq.s32.totalorder %s14, 1
    %p116 = por %p114, %p115
    %p117 = scmp.ne.s32.totalorder %s106, %s107
    %p118 = scmp.eq.s32.totalorder %s14, 0
    %p119 = por %p117, %p118
    %p120 = scmp.ne.s32.totalorder %s106, %s107
    %p121 = scmp.eq.s32.totalorder %s15, 1
    %p122 = por %p120, %p121
    %p124 = scmp.ne.s32.totalorder %s107, %s123
    %p125 = scmp.eq.s32.totalorder %s15, 0
    %p126 = por %p124, %p125
    %p127 = scmp.le.s32.totalorder 1, %s9
    %p128 = scmp.lt.s32.totalorder %s9, 3
    %p129 = pnand %p127, %p128
    %p130 = pneg %p129
    // Predicated region
    $region9: #{_deconv3d_matmul_impl.1} parent=5 // pred_check
      _
    $region10: #{_deconv3d_matmul_impl.1} parent=5 // pred_check_branch
      %132 = sbr.rel (%p129) target = $region12
    $region11: #{_deconv3d_matmul_impl.1} parent=5 // pred_region
      %s133 = ssub.s32 %s9, 1
      // Predicated region
      $region13: #{_deconv3d_matmul_impl.1} parent=11 // pred_check
        %p134 = pneg %p42
      $region14: #{_deconv3d_matmul_impl.1} parent=11 // pred_check_branch
        %136 = sbr.rel (%p134) target = $region16
      $region15: #{_deconv3d_matmul_impl.1} parent=11 // pred_region
        _
      $region16: #{_deconv3d_matmul_impl.1} parent=11 // pred_fallthru
        _
      // Predicated region
      $region17: #{_deconv3d_matmul_impl.1} parent=11 // pred_check
        %p137 = pneg %p63
      $region18: #{_deconv3d_matmul_impl.1} parent=11 // pred_check_branch
        %139 = sbr.rel (%p137) target = $region20
      $region19: #{_deconv3d_matmul_impl.1} parent=11 // pred_region
        _
      $region20: #{_deconv3d_matmul_impl.1} parent=11 // pred_fallthru
        _
    $region12: #{_deconv3d_matmul_impl.1} parent=5 // pred_fallthru
      _
    %p140 = scmp.lt.s32.totalorder %s9, 2
    // Predicated region
    $region21: #{_deconv3d_matmul_impl.1} parent=5 // pred_check
      %p141 = pneg %p140
    $region22: #{_deconv3d_matmul_impl.1} parent=5 // pred_check_branch
      %143 = sbr.rel (%p141) target = $region24
    $region23: #{_deconv3d_matmul_impl.1} parent=5 // pred_region
      // Predicated region
      $region25: #{_deconv3d_matmul_impl.1} parent=23 // pred_check
        %p144 = pneg %p85
      $region26: #{_deconv3d_matmul_impl.1} parent=23 // pred_check_branch
        %146 = sbr.rel (%p144) target = $region28
      $region27: #{_deconv3d_matmul_impl.1} parent=23 // pred_region
        %s147 = smul.u32 4, %s17
        %p148 = scmp.lt.s32.totalorder %s16, 1
        %s149 = scalar_select %p148, %s16, 1
        %p150 = scmp.lt.s32.totalorder %s147, 3
        %s151 = scalar_select %p150, %s147, 3
        %s152 = smul.addr %s149, 4
        %s153 = sadd.s32 %s151, %s152
        %s154 = smul.addr %s153, 4
        %s155 = scalar_lea.vmem %s2, %s154
        %s156 = smul.u32 4, %s17
      $region28: #{_deconv3d_matmul_impl.1} parent=23 // pred_fallthru
        _
    $region24: #{_deconv3d_matmul_impl.1} parent=5 // pred_fallthru
      _
    %p157 = scmp.le.s32.totalorder 1, %s9
    %p158 = scmp.lt.s32.totalorder %s9, 3
    %p159 = pnand %p157, %p158
    %p160 = pneg %p159
    // Predicated region
    $region29: #{_deconv3d_matmul_impl.1} parent=5 // pred_check
      _
    $region30: #{_deconv3d_matmul_impl.1} parent=5 // pred_check_branch
      %162 = sbr.rel (%p159) target = $region32
    $region31: #{_deconv3d_matmul_impl.1} parent=5 // pred_region
      %s163 = ssub.s32 %s9, 1
      %p164 = pneg %p42
      %p165 = pneg %p39
      %p166 = pneg %p63
      %p167 = pneg %p60
      %s168 = smul.u32 4, %s19
      %p169 = scmp.lt.s32.totalorder %s18, 1
      %s170 = scalar_select %p169, %s18, 1
      %p171 = scmp.lt.s32.totalorder %s168, 3
      %s172 = scalar_select %p171, %s168, 3
      %s173 = smul.addr %s170, 4
      %s174 = sadd.s32 %s172, %s173
      %s175 = smul.addr %s174, 4
      %s176 = scalar_lea.vmem %s2, %s175
      %p177 = pneg %p91
      %p178 = pneg %p88
      %p179 = pneg %p119
      %p180 = pneg %p116
      %s181 = smul.u32 4, %s19
      %p182 = scmp.lt.s32.totalorder %s18, 1
      %s183 = scalar_select %p182, %s18, 1
      %p184 = scmp.lt.s32.totalorder %s181, 3
      %s185 = scalar_select %p184, %s181, 3
      %s186 = smul.addr %s183, 32
      %s187 = sadd.s32 %s185, %s186
      %s188 = smul.addr %s187, 8
      %s189 = scalar_lea.vmem %s3, %s188
      %s190 = smul.u32 4, %s19
      %p191 = scmp.lt.s32.totalorder %s18, 1
      %s192 = scalar_select %p191, %s18, 1
      %p193 = scmp.lt.s32.totalorder %s190, 3
      %s194 = scalar_select %p193, %s190, 3
      %s195 = smul.addr %s192, 4
      %s196 = sadd.s32 %s194, %s195
      %s197 = smul.addr %s196, 4
      %s198 = scalar_lea.vmem %s2, %s197
      %s199 = smul.u32 4, %s19
      %s200 = smul.u32 4, %s19
      %p201 = scmp.lt.s32.totalorder %s18, 1
      %s202 = scalar_select %p201, %s18, 1
      %p203 = scmp.lt.s32.totalorder %s200, 3
      %s204 = scalar_select %p203, %s200, 3
      %s205 = smul.addr %s202, 32
      %s206 = sadd.s32 %s204, %s205
      %s207 = smul.addr %s206, 8
      %s208 = scalar_lea.vmem %s3, %s207
      %s209 = smul.u32 4, %s19
      %v210 = vld [vmem:[%s0] sm:$0xff]
      %v211 = vld [vmem:[%s0 + $0x8] sm:$0xff]
      %v212 = vld [vmem:[%s0 + $0x10] sm:$0xff]
      %v213 = vld [vmem:[%s0 + $0x18] sm:$0xff]
      %v214 = vld [vmem:[%s0 + $0x20] sm:$0xff]
      %v215 = vld [vmem:[%s0 + $0x28] sm:$0xff]
      %v216 = vld [vmem:[%s0 + $0x30] sm:$0xff]
      %v217 = vld [vmem:[%s0 + $0x38] sm:$0xff]
      %v218 = vld [vmem:[%s198] sm:$0xff]
      %v219 = vld [vmem:[%s198 + $0x8] sm:$0xff]
      %v220 = vld [vmem:[%s1] sm:$0xff]
      %v221 = vld [vmem:[%s1 + $0x8] sm:$0xff]
      %v222 = vld [vmem:[%s1 + $0x10] sm:$0xff]
      %v223 = vld [vmem:[%s1 + $0x18] sm:$0xff]
      %v224 = vld [vmem:[%s1 + $0x20] sm:$0xff]
      %v225 = vld [vmem:[%s1 + $0x28] sm:$0xff]
      %v226 = vld [vmem:[%s1 + $0x30] sm:$0xff]
      %v227 = vld [vmem:[%s1 + $0x38] sm:$0xff]
      %229 = vset.pattern.permute.xlu0 0
      %230 = vperm.xlu0 %229, %v220
      %v231 = vpop.permute.xlu0 %230
      %234 = vset.pattern.permute.xlu0 0
      %235 = vperm.xlu0 %234, %v221
      %v236 = vpop.permute.xlu0 %235
      %239 = vset.pattern.permute.xlu0 0
      %240 = vperm.xlu0 %239, %v222
      %v241 = vpop.permute.xlu0 %240
      %244 = vset.pattern.permute.xlu0 0
      %245 = vperm.xlu0 %244, %v223
      %v246 = vpop.permute.xlu0 %245
      %249 = vset.pattern.permute.xlu0 0
      %250 = vperm.xlu0 %249, %v224
      %v251 = vpop.permute.xlu0 %250
      %254 = vset.pattern.permute.xlu0 0
      %255 = vperm.xlu0 %254, %v225
      %v256 = vpop.permute.xlu0 %255
      %259 = vset.pattern.permute.xlu0 0
      %260 = vperm.xlu0 %259, %v226
      %v261 = vpop.permute.xlu0 %260
      %264 = vset.pattern.permute.xlu0 0
      %265 = vperm.xlu0 %264, %v227
      %v266 = vpop.permute.xlu0 %265
      %v270 = vcombine.high %v218, %v218
      %v271 = vcombine.high %v219, %v219
      %vm272 = vcmask 31744
      %v274 = vsel %vm272, %v210, 0
      %v277 = vsel %vm272, %v211, 0
      %v280 = vsel %vm272, %v212, 0
      %v283 = vsel %vm272, %v213, 0
      %v286 = vsel %vm272, %v214, 0
      %v289 = vsel %vm272, %v215, 0
      %v292 = vsel %vm272, %v216, 0
      %v295 = vsel %vm272, %v217, 0
      %vm297 = vcmask 1043456
      %v298 = vsel %vm297, %v218, 0
      %v300 = vsel %vm297, %v270, 0
      %v302 = vsel %vm297, %v219, 0
      %v304 = vsel %vm297, %v271, 0
      %306 = vmatprep.subr.mxu0 %v300
      %307 = vmatpush1.msra.mxu0 %v298
      %308 = vmatprep.subr.mxu0 0.0
      %309 = vmatpush1.msra.mxu0 0.0
      %310 = vmatprep.subr.mxu0 0.0
      %311 = vmatpush1.msra.mxu0 0.0
      %312 = vmatprep.subr.mxu0 0.0
      %313 = vmatpush1.msra.mxu0 0.0
      %314 = vmatprep.subr.mxu0 0.0
      %315 = vmatpush1.msra.mxu0 0.0
      %316 = vmatprep.subr.mxu0 0.0
      %317 = vmatpush1.msra.mxu0 0.0
      %318 = vmatprep.subr.mxu0 0.0
      %319 = vmatpush1.msra.mxu0 0.0
      %320 = vmatprep.subr.mxu0 0.0
      %321 = vmatpush1.msra.mxu0 0.0
      %322 = vmatprep.subr.mxu0 0.0
      %323 = vmatpush1.msra.mxu0 0.0
      %324 = vmatprep.subr.mxu0 0.0
      %325 = vmatpush1.msra.mxu0 0.0
      %326 = vmatprep.subr.mxu0 0.0
      %327 = vmatpush1.msra.mxu0 0.0
      %328 = vmatprep.subr.mxu0 0.0
      %329 = vmatpush1.msra.mxu0 0.0
      %330 = vmatprep.subr.mxu0 0.0
      %331 = vmatpush1.msra.mxu0 0.0
      %332 = vmatprep.subr.mxu0 0.0
      %333 = vmatpush1.msra.mxu0 0.0
      %334 = vmatprep.subr.mxu0 0.0
      %335 = vmatpush1.msra.mxu0 0.0
      %336 = vmatprep.subr.mxu0 0.0
      %337 = vmatpush1.msra.mxu0 0.0
      %338 = vmatprep.subr.mxu0 0.0
      %339 = vmatpush1.msra.mxu0 0.0
      %340 = vmatprep.subr.mxu0 0.0
      %341 = vmatpush1.msra.mxu0 0.0
      %342 = vmatprep.subr.mxu0 0.0
      %343 = vmatpush1.msra.mxu0 0.0
      %344 = vmatprep.subr.mxu0 0.0
      %345 = vmatpush1.msra.mxu0 0.0
      %346 = vmatprep.subr.mxu0 0.0
      %347 = vmatpush1.msra.mxu0 0.0
      %348 = vmatprep.subr.mxu0 0.0
      %349 = vmatpush1.msra.mxu0 0.0
      %350 = vmatprep.subr.mxu0 0.0
      %351 = vmatpush1.msra.mxu0 0.0
      %352 = vmatprep.subr.mxu0 0.0
      %353 = vmatpush1.msra.mxu0 0.0
      %354 = vmatprep.subr.mxu0 0.0
      %355 = vmatpush1.msra.mxu0 0.0
      %356 = vmatprep.subr.mxu0 0.0
      %357 = vmatpush1.msra.mxu0 0.0
      %358 = vmatprep.subr.mxu0 0.0
      %359 = vmatpush1.msra.mxu0 0.0
      %360 = vmatprep.subr.mxu0 0.0
      %361 = vmatpush1.msra.mxu0 0.0
      %362 = vmatprep.subr.mxu0 0.0
      %363 = vmatpush1.msra.mxu0 0.0
      %364 = vmatprep.subr.mxu0 0.0
      %365 = vmatpush1.msra.mxu0 0.0
      %366 = vmatprep.subr.mxu0 0.0
      %367 = vmatpush1.msra.mxu0 0.0
      %368 = vmatprep.subr.mxu0 0.0
      %369 = vmatpush1.msra.mxu0 0.0
      %370 = vmatprep.mubr.f32.mxu0 0.0
      %371 = vmatmul.mubr.f32.gmra.mrb[0].mxu0 %v274
      %v372 = vpop.f32.mrb[0].mxu0
      %v373 = vadd.f32 %v231, %v372
      %v374 = vpop.f32.mrb[0].mxu0
      %v375 = vadd.f32 %v231, %v374
      %376 = vmatprep.mubr.f32.mxu0 0.0
      %377 = vmatmul.mubr.f32.gmra.mrb[0].mxu0 %v277
      %v378 = vpop.f32.mrb[0].mxu0
      %v379 = vadd.f32 %v236, %v378
      %v380 = vpop.f32.mrb[0].mxu0
      %v381 = vadd.f32 %v236, %v380
      %382 = vmatprep.mubr.f32.mxu0 0.0
      %383 = vmatmul.mubr.f32.gmra.mrb[0].mxu0 %v280
      %v384 = vpop.f32.mrb[0].mxu0
      %v385 = vadd.f32 %v241, %v384
      %v386 = vpop.f32.mrb[0].mxu0
      %v387 = vadd.f32 %v241, %v386
      %388 = vmatprep.mubr.f32.mxu0 0.0
      %389 = vmatmul.mubr.f32.gmra.mrb[0].mxu0 %v283
      %v390 = vpop.f32.mrb[0].mxu0
      %v391 = vadd.f32 %v246, %v390
      %v392 = vpop.f32.mrb[0].mxu0
      %v393 = vadd.f32 %v246, %v392
      %394 = vmatprep.mubr.f32.mxu0 0.0
      %395 = vmatmul.mubr.f32.gmra.mrb[0].mxu0 %v286
      %v396 = vpop.f32.mrb[0].mxu0
      %v397 = vadd.f32 %v251, %v396
      %v398 = vpop.f32.mrb[0].mxu0
      %v399 = vadd.f32 %v251, %v398
      %400 = vmatprep.mubr.f32.mxu0 0.0
      %401 = vmatmul.mubr.f32.gmra.mrb[0].mxu0 %v289
      %v402 = vpop.f32.mrb[0].mxu0
      %v403 = vadd.f32 %v256, %v402
      %v404 = vpop.f32.mrb[0].mxu0
      %v405 = vadd.f32 %v256, %v404
      %406 = vmatprep.mubr.f32.mxu0 0.0
      %407 = vmatmul.mubr.f32.gmra.mrb[0].mxu0 %v292
      %v408 = vpop.f32.mrb[0].mxu0
      %v409 = vadd.f32 %v261, %v408
      %v410 = vpop.f32.mrb[0].mxu0
      %v411 = vadd.f32 %v261, %v410
      %412 = vmatprep.mubr.f32.mxu0 0.0
      %413 = vmatmul.mubr.f32.gmra.mrb[0].mxu0 %v295
      %v414 = vpop.f32.mrb[0].mxu0
      %v415 = vadd.f32 %v266, %v414
      %v416 = vpop.f32.mrb[0].mxu0
      %v417 = vadd.f32 %v266, %v416
      %418 = vdwg.mxu0
      %419 = vmatprep.subr.mxu0 %v304
      %420 = vmatpush1.msra.mxu0 %v302
      %421 = vmatprep.subr.mxu0 0.0
      %422 = vmatpush1.msra.mxu0 0.0
      %423 = vmatprep.subr.mxu0 0.0
      %424 = vmatpush1.msra.mxu0 0.0
      %425 = vmatprep.subr.mxu0 0.0
      %426 = vmatpush1.msra.mxu0 0.0
      %427 = vmatprep.subr.mxu0 0.0
      %428 = vmatpush1.msra.mxu0 0.0
      %429 = vmatprep.subr.mxu0 0.0
      %430 = vmatpush1.msra.mxu0 0.0
      %431 = vmatprep.subr.mxu0 0.0
      %432 = vmatpush1.msra.mxu0 0.0
      %433 = vmatprep.subr.mxu0 0.0
      %434 = vmatpush1.msra.mxu0 0.0
      %435 = vmatprep.subr.mxu0 0.0
      %436 = vmatpush1.msra.mxu0 0.0
      %437 = vmatprep.subr.mxu0 0.0
      %438 = vmatpush1.msra.mxu0 0.0
      %439 = vmatprep.subr.mxu0 0.0
      %440 = vmatpush1.msra.mxu0 0.0
      %441 = vmatprep.subr.mxu0 0.0
      %442 = vmatpush1.msra.mxu0 0.0
      %443 = vmatprep.subr.mxu0 0.0
      %444 = vmatpush1.msra.mxu0 0.0
      %445 = vmatprep.subr.mxu0 0.0
      %446 = vmatpush1.msra.mxu0 0.0
      %447 = vmatprep.subr.mxu0 0.0
      %448 = vmatpush1.msra.mxu0 0.0
      %449 = vmatprep.subr.mxu0 0.0
      %450 = vmatpush1.msra.mxu0 0.0
      %451 = vmatprep.subr.mxu0 0.0
      %452 = vmatpush1.msra.mxu0 0.0
      %453 = vmatprep.subr.mxu0 0.0
      %454 = vmatpush1.msra.mxu0 0.0
      %455 = vmatprep.subr.mxu0 0.0
      %456 = vmatpush1.msra.mxu0 0.0
      %457 = vmatprep.subr.mxu0 0.0
      %458 = vmatpush1.msra.mxu0 0.0
      %459 = vmatprep.subr.mxu0 0.0
      %460 = vmatpush1.msra.mxu0 0.0
      %461 = vmatprep.subr.mxu0 0.0
      %462 = vmatpush1.msra.mxu0 0.0
      %463 = vmatprep.subr.mxu0 0.0
      %464 = vmatpush1.msra.mxu0 0.0
      %465 = vmatprep.subr.mxu0 0.0
      %466 = vmatpush1.msra.mxu0 0.0
      %467 = vmatprep.subr.mxu0 0.0
      %468 = vmatpush1.msra.mxu0 0.0
      %469 = vmatprep.subr.mxu0 0.0
      %470 = vmatpush1.msra.mxu0 0.0
      %471 = vmatprep.subr.mxu0 0.0
      %472 = vmatpush1.msra.mxu0 0.0
      %473 = vmatprep.subr.mxu0 0.0
      %474 = vmatpush1.msra.mxu0 0.0
      %475 = vmatprep.subr.mxu0 0.0
      %476 = vmatpush1.msra.mxu0 0.0
      %477 = vmatprep.subr.mxu0 0.0
      %478 = vmatpush1.msra.mxu0 0.0
      %479 = vmatprep.subr.mxu0 0.0
      %480 = vmatpush1.msra.mxu0 0.0
      %481 = vmatprep.subr.mxu0 0.0
      %482 = vmatpush1.msra.mxu0 0.0
      %483 = vmatprep.mubr.f32.mxu0 0.0
      %484 = vmatmul.mubr.f32.gmra.mrb[0].mxu0 %v274
      %v485 = vpop.f32.mrb[0].mxu0
      %v486 = vadd.f32 %v231, %v485
      %v487 = vpop.f32.mrb[0].mxu0
      %v488 = vadd.f32 %v231, %v487
      %489 = vmatprep.mubr.f32.mxu0 0.0
      %490 = vmatmul.mubr.f32.gmra.mrb[0].mxu0 %v277
      %v491 = vpop.f32.mrb[0].mxu0
      %v492 = vadd.f32 %v236, %v491
      %v493 = vpop.f32.mrb[0].mxu0
      %v494 = vadd.f32 %v236, %v493
      %495 = vmatprep.mubr.f32.mxu0 0.0
      %496 = vmatmul.mubr.f32.gmra.mrb[0].mxu0 %v280
      %v497 = vpop.f32.mrb[0].mxu0
      %v498 = vadd.f32 %v241, %v497
      %v499 = vpop.f32.mrb[0].mxu0
      %v500 = vadd.f32 %v241, %v499
      %501 = vmatprep.mubr.f32.mxu0 0.0
      %502 = vmatmul.mubr.f32.gmra.mrb[0].mxu0 %v283
      %v503 = vpop.f32.mrb[0].mxu0
      %v504 = vadd.f32 %v246, %v503
      %v505 = vpop.f32.mrb[0].mxu0
      %v506 = vadd.f32 %v246, %v505
      %507 = vmatprep.mubr.f32.mxu0 0.0
      %508 = vmatmul.mubr.f32.gmra.mrb[0].mxu0 %v286
      %v509 = vpop.f32.mrb[0].mxu0
      %v510 = vadd.f32 %v251, %v509
      %v511 = vpop.f32.mrb[0].mxu0
      %v512 = vadd.f32 %v251, %v511
      %513 = vmatprep.mubr.f32.mxu0 0.0
      %514 = vmatmul.mubr.f32.gmra.mrb[0].mxu0 %v289
      %v515 = vpop.f32.mrb[0].mxu0
      %v516 = vadd.f32 %v256, %v515
      %v517 = vpop.f32.mrb[0].mxu0
      %v518 = vadd.f32 %v256, %v517
      %519 = vmatprep.mubr.f32.mxu0 0.0
      %520 = vmatmul.mubr.f32.gmra.mrb[0].mxu0 %v292
      %v521 = vpop.f32.mrb[0].mxu0
      %v522 = vadd.f32 %v261, %v521
      %v523 = vpop.f32.mrb[0].mxu0
      %v524 = vadd.f32 %v261, %v523
      %525 = vmatprep.mubr.f32.mxu0 0.0
      %526 = vmatmul.mubr.f32.gmra.mrb[0].mxu0 %v295
      %v527 = vpop.f32.mrb[0].mxu0
      %v528 = vadd.f32 %v266, %v527
      %v529 = vpop.f32.mrb[0].mxu0
      %v530 = vadd.f32 %v266, %v529
      %531 = vdwg.mxu0
      %532 = vst [vmem:[%s208] sm:$0xff] %v373
      %533 = vst [vmem:[%s208 + $0x8] sm:$0xff] %v375
      %534 = vst [vmem:[%s208 + $0x10] sm:$0xff] %v486
      %535 = vst [vmem:[%s208 + $0x18] sm:$0xff] %v488
      %536 = vst [vmem:[%s208 + $0x20] sm:$0xff] %v379
      %537 = vst [vmem:[%s208 + $0x28] sm:$0xff] %v381
      %538 = vst [vmem:[%s208 + $0x30] sm:$0xff] %v492
      %539 = vst [vmem:[%s208 + $0x38] sm:$0xff] %v494
      %540 = vst [vmem:[%s208 + $0x40] sm:$0xff] %v385
      %541 = vst [vmem:[%s208 + $0x48] sm:$0xff] %v387
      %542 = vst [vmem:[%s208 + $0x50] sm:$0xff] %v498
      %543 = vst [vmem:[%s208 + $0x58] sm:$0xff] %v500
      %544 = vst [vmem:[%s208 + $0x60] sm:$0xff] %v391
      %545 = vst [vmem:[%s208 + $0x68] sm:$0xff] %v393
      %546 = vst [vmem:[%s208 + $0x70] sm:$0xff] %v504
      %547 = vst [vmem:[%s208 + $0x78] sm:$0xff] %v506
      %548 = vst [vmem:[%s208 + $0x80] sm:$0xff] %v397
      %549 = vst [vmem:[%s208 + $0x88] sm:$0xff] %v399
      %550 = vst [vmem:[%s208 + $0x90] sm:$0xff] %v510
      %551 = vst [vmem:[%s208 + $0x98] sm:$0xff] %v512
      %552 = vst [vmem:[%s208 + $0xa0] sm:$0xff] %v403
      %553 = vst [vmem:[%s208 + $0xa8] sm:$0xff] %v405
      %554 = vst [vmem:[%s208 + $0xb0] sm:$0xff] %v516
      %555 = vst [vmem:[%s208 + $0xb8] sm:$0xff] %v518
      %556 = vst [vmem:[%s208 + $0xc0] sm:$0xff] %v409
      %557 = vst [vmem:[%s208 + $0xc8] sm:$0xff] %v411
      %558 = vst [vmem:[%s208 + $0xd0] sm:$0xff] %v522
      %559 = vst [vmem:[%s208 + $0xd8] sm:$0xff] %v524
      %560 = vst [vmem:[%s208 + $0xe0] sm:$0xff] %v415
      %561 = vst [vmem:[%s208 + $0xe8] sm:$0xff] %v417
      %562 = vst [vmem:[%s208 + $0xf0] sm:$0xff] %v528
      %563 = vst [vmem:[%s208 + $0xf8] sm:$0xff] %v530
      %s564 = smul.u32 4, %s19
      %p565 = scmp.lt.s32.totalorder %s18, 1
      %s566 = scalar_select %p565, %s18, 1
      %p567 = scmp.lt.s32.totalorder %s564, 3
      %s568 = scalar_select %p567, %s564, 3
      %s569 = smul.addr %s566, 32
      %s570 = sadd.s32 %s568, %s569
      %s571 = smul.addr %s570, 8
      %s572 = scalar_lea.vmem %s3, %s571
      // Predicated region
      $region33: #{_deconv3d_matmul_impl.1} parent=31 // pred_check
        %p573 = pneg %p116
      $region34: #{_deconv3d_matmul_impl.1} parent=31 // pred_check_branch
        %575 = sbr.rel (%p573) target = $region36
      $region35: #{_deconv3d_matmul_impl.1} parent=31 // pred_region
        %s576 = smul.u32 4, %s19
      $region36: #{_deconv3d_matmul_impl.1} parent=31 // pred_fallthru
        _
    $region32: #{_deconv3d_matmul_impl.1} parent=5 // pred_fallthru
      _
    %p577 = scmp.le.s32.totalorder 2, %s9
    // Predicated region
    $region37: #{_deconv3d_matmul_impl.1} parent=5 // pred_check
      %p578 = pneg %p577
    $region38: #{_deconv3d_matmul_impl.1} parent=5 // pred_check_branch
      %580 = sbr.rel (%p578) target = $region40
    $region39: #{_deconv3d_matmul_impl.1} parent=5 // pred_region
      %s581 = ssub.s32 %s9, 2
      // Predicated region
      $region41: #{_deconv3d_matmul_impl.1} parent=39 // pred_check
        %p582 = pneg %p122
      $region42: #{_deconv3d_matmul_impl.1} parent=39 // pred_check_branch
        %584 = sbr.rel (%p582) target = $region44
      $region43: #{_deconv3d_matmul_impl.1} parent=39 // pred_region
        %s585 = smul.u32 4, %s21
        %p586 = scmp.lt.s32.totalorder %s20, 1
        %s587 = scalar_select %p586, %s20, 1
        %p588 = scmp.lt.s32.totalorder %s585, 3
        %s589 = scalar_select %p588, %s585, 3
        %s590 = smul.addr %s587, 32
        %s591 = sadd.s32 %s589, %s590
        %s592 = smul.addr %s591, 8
        %s593 = scalar_lea.vmem %s3, %s592
      $region44: #{_deconv3d_matmul_impl.1} parent=39 // pred_fallthru
        _
    $region40: #{_deconv3d_matmul_impl.1} parent=5 // pred_fallthru
      _
  $region6: #{_deconv3d_matmul_impl.1} parent=0 // loop_footer
    %s13 = sadd.s32 1, %s9
  $region7: #{_deconv3d_matmul_impl.1} parent=0 // loop_footer_branch
    %8 = sbr.rel target = $region3
  $region8: #{_deconv3d_matmul_impl.1} parent=0 // loop_exit
    _

</llo_original>
